<compile_context>
chip_gen: v6e
topology: v6e:2x2x1
jax: 0.10.0
libtpu: 0.0.40
codegen_flags: <defaults>
</compile_context>

<pallas_src>
import functools
import math

import jax
import jax.numpy as jnp
from jax import lax
from jax.experimental import pallas as pl
from jax.experimental.pallas import tpu as pltpu


# ----------------------------- linear kernels -------------------------------

def _linear_bias_kernel(x_ref, w_ref, b_ref, o_ref):
    # x_ref: (tm, K)   w_ref: (tn, K) [PyTorch layout]   b_ref: (1, tn)
    acc = lax.dot_general(x_ref[...], w_ref[...],
                          dimension_numbers=(((1,), (1,)), ((), ())),
                          preferred_element_type=jnp.float32)
    acc = acc + b_ref[...].astype(jnp.float32)
    o_ref[...] = acc.astype(o_ref.dtype)


def _linear_nobias_kernel(x_ref, w_ref, o_ref):
    acc = lax.dot_general(x_ref[...], w_ref[...],
                          dimension_numbers=(((1,), (1,)), ((), ())),
                          preferred_element_type=jnp.float32)
    o_ref[...] = acc.astype(o_ref.dtype)


def pallas_linear(x2d, weight, bias=None, *, tm_pref=256, tn_pref=512):
    """x2d: (M, K); weight: (N, K) (PyTorch nn.Linear layout); bias: (N,) or None."""
    m, k_dim = x2d.shape
    n = weight.shape[0]

    # Tile sizes: full extent when small (satisfies the (8,128) rule via
    # "equals full dim"), otherwise 8/128-aligned tiles for lane-dense stores.
    tm = m if m <= tm_pref else tm_pref          # tm_pref % 8 == 0
    tn = n if n <= tn_pref else tn_pref          # tn_pref % 128 == 0
    grid = (pl.cdiv(m, tm), pl.cdiv(n, tn))

    x_spec = pl.BlockSpec((tm, k_dim), lambda i, j: (i, 0))
    w_spec = pl.BlockSpec((tn, k_dim), lambda i, j: (j, 0))
    o_spec = pl.BlockSpec((tm, tn), lambda i, j: (i, j))

    itemsize = x2d.dtype.itemsize
    cost = pl.CostEstimate(
        flops=2 * m * n * k_dim,
        transcendentals=0,
        bytes_accessed=(m * k_dim + n * k_dim + m * n
                        + (n if bias is not None else 0)) * itemsize)
    params = pltpu.CompilerParams(
        dimension_semantics=("parallel", "parallel"),
        vmem_limit_bytes=64 * 1024 * 1024)

    if bias is not None:
        b_spec = pl.BlockSpec((1, tn), lambda i, j: (0, j))
        return pl.pallas_call(
            _linear_bias_kernel,
            out_shape=jax.ShapeDtypeStruct((m, n), x2d.dtype),
            grid=grid,
            in_specs=[x_spec, w_spec, b_spec],
            out_specs=o_spec,
            compiler_params=params,
            cost_estimate=cost,
        )(x2d, weight, bias.reshape(1, n))

    return pl.pallas_call(
        _linear_nobias_kernel,
        out_shape=jax.ShapeDtypeStruct((m, n), x2d.dtype),
        grid=grid,
        in_specs=[x_spec, w_spec],
        out_specs=o_spec,
        compiler_params=params,
        cost_estimate=cost,
    )(x2d, weight)


# --------------------------- attention kernel --------------------------------

def _attn_kernel(q_ref, k_ref, v_ref, o_ref, *, scale):
    # Refs are (1, S, Dk) blocks: one (batch, head) pair per grid step.
    q = q_ref[0].astype(jnp.float32)                  # (Sq, Dk)
    k = k_ref[0].astype(jnp.float32)                  # (Sk, Dk)
    v = v_ref[0]                                      # (Sk, Dk)
    s = lax.dot_general(q, k, dimension_numbers=(((1,), (1,)), ((), ())),
                        preferred_element_type=jnp.float32) * scale   # (Sq, Sk)
    s_max = jnp.max(s, axis=-1, keepdims=True)
    p = jnp.exp(s - s_max)
    denom = jnp.sum(p, axis=-1, keepdims=True)
    attn = p / denom                                  # softmax over key axis
    o = jnp.dot(attn.astype(v.dtype), v, preferred_element_type=jnp.float32)
    o_ref[0] = o.astype(o_ref.dtype)


def pallas_attention(q, k, v, scale):
    """q: (B*H, Sq, Dk); k, v: (B*H, Sk, Dk). Whole sequence per grid step."""
    bh, sq, dk = q.shape
    sk = k.shape[1]
    itemsize = q.dtype.itemsize
    cost = pl.CostEstimate(
        flops=4 * bh * sq * sk * dk,
        transcendentals=bh * sq * sk,
        bytes_accessed=(2 * bh * sq * dk + 2 * bh * sk * dk) * itemsize)
    return pl.pallas_call(
        functools.partial(_attn_kernel, scale=scale),
        out_shape=jax.ShapeDtypeStruct((bh, sq, dk), q.dtype),
        grid=(bh,),
        in_specs=[pl.BlockSpec((1, sq, dk), lambda b: (b, 0, 0)),
                  pl.BlockSpec((1, sk, dk), lambda b: (b, 0, 0)),
                  pl.BlockSpec((1, sk, dk), lambda b: (b, 0, 0))],
        out_specs=pl.BlockSpec((1, sq, dk), lambda b: (b, 0, 0)),
        compiler_params=pltpu.CompilerParams(
            dimension_semantics=("parallel",),
            vmem_limit_bytes=64 * 1024 * 1024),
        cost_estimate=cost,
    )(q, k, v)


# ------------------------------ MHA forward ----------------------------------

def multi_head_attention(query, key, value, params, heads, mask=None):
    """query/key/value: (seq_len, batch, d_model). Matches the PyTorch forward
    (eval mode, mask=None)."""
    # TODO(synk): optional attention mask and training-mode dropout are not
    # implemented; this covers the mask=None / eval path of the module.
    assert mask is None
    seq_q, batch, d_model = query.shape
    d_k = d_model // heads
    scale = 1.0 / math.sqrt(d_k)

    def project(x, w, b):
        s = x.shape[0]
        y = pallas_linear(x.reshape(s * batch, d_model), w, b)
        return y.reshape(s, batch, heads, d_k)

    q = project(query, params["wq"], params["bq"])    # (Sq, B, H, Dk)
    k = project(key, params["wk"], params["bk"])
    v = project(value, params["wv"], params["bv"])

    def to_bh(t):
        s = t.shape[0]
        return jnp.transpose(t, (1, 2, 0, 3)).reshape(batch * heads, s, d_k)

    o = pallas_attention(to_bh(q), to_bh(k), to_bh(v), scale)   # (B*H, Sq, Dk)

    x = o.reshape(batch, heads, seq_q, d_k).transpose(2, 0, 1, 3)
    x = x.reshape(seq_q * batch, d_model)
    out = pallas_linear(x, params["wo"], params["bo"])
    return out.reshape(seq_q, batch, d_model)


# ----------------------------- pure-JAX reference ----------------------------

def reference_mha(query, key, value, params, heads):
    S, B, D = query.shape
    dk = D // heads
    hp = lax.Precision.HIGHEST

    def prep(x, w, b):
        y = jnp.einsum('sbd,nd->sbn', x, w, precision=hp)
        if b is not None:
            y = y + b
        return y.reshape(x.shape[0], B, heads, dk)

    q = prep(query, params['wq'], params['bq'])
    k = prep(key, params['wk'], params['bk'])
    v = prep(value, params['wv'], params['bv'])
    scores = jnp.einsum('ibhd,jbhd->ijbh', q, k, precision=hp) / math.sqrt(dk)
    attn = jax.nn.softmax(scores, axis=1)
    x = jnp.einsum('ijbh,jbhd->ibhd', attn, v, precision=hp)
    x = x.reshape(S, B, D)
    return jnp.einsum('sbd,nd->sbn', x, params['wo'], precision=hp) + params['bo']


if __name__ == "__main__":
    seq_len, batch, d_model, heads = 8, 2, 32, 4
    d_k = d_model // heads

    key = jax.random.PRNGKey(0)
    keys = jax.random.split(key, 11)
    bound = 1.0 / math.sqrt(d_model)

    def unif(k, shape):
        return jax.random.uniform(k, shape, minval=-bound, maxval=bound,
                                  dtype=jnp.float32)

    # Weights in PyTorch nn.Linear layout: (out_features, in_features).
    params = {
        "wq": unif(keys[0], (d_model, d_model)), "bq": unif(keys[1], (d_model,)),
        "wk": unif(keys[2], (d_model, d_model)), "bk": unif(keys[3], (d_model,)),
        "wv": unif(keys[4], (d_model, d_model)), "bv": unif(keys[5], (d_model,)),
        "wo": unif(keys[6], (d_model, d_model)), "bo": unif(keys[7], (d_model,)),
    }

    q_in = jax.random.normal(keys[8], (seq_len, batch, d_model), dtype=jnp.float32)
    k_in = jax.random.normal(keys[9], (seq_len, batch, d_model), dtype=jnp.float32)
    v_in = jax.random.normal(keys[10], (seq_len, batch, d_model), dtype=jnp.float32)

    out = multi_head_attention(q_in, k_in, v_in, params, heads)
    out = jax.block_until_ready(out)

    ref = reference_mha(q_in, k_in, v_in, params, heads)
    assert out.shape == (seq_len, batch, d_model), out.shape
    max_err = float(jnp.max(jnp.abs(out - ref)))
    assert jnp.allclose(out, ref, atol=2e-4, rtol=2e-4), f"mismatch, max_err={max_err}"

    print("KERNEL_OK")
</pallas_src>

<mosaic_0001>
module attributes {stable_mosaic.version = 11 : i64} {
  func.func @_linear_bias_kernel(%arg0: i32, %arg1: i32, %arg2: memref<16x32xf32, #tpu.memory_space<vmem>>, %arg3: memref<32x32xf32, #tpu.memory_space<vmem>>, %arg4: memref<1x32xf32, #tpu.memory_space<vmem>>, %arg5: memref<16x32xf32, #tpu.memory_space<vmem>>) attributes {dimension_semantics = [#tpu.dimension_semantics<parallel>, #tpu.dimension_semantics<parallel>], iteration_bounds = array<i64: 1, 1>, scalar_prefetch = 0 : i64, scratch_operands = 0 : i64, tpu.core_type = #tpu.core_type<tc>, window_params = [{transform_indices = @transform_0, window_bounds = array<i64: 16, 32>}, {transform_indices = @transform_1, window_bounds = array<i64: 32, 32>}, {transform_indices = @transform_2, window_bounds = array<i64: 1, 32>}, {transform_indices = @transform_3, window_bounds = array<i64: 16, 32>}]} {
    %c0 = arith.constant 0 : index
    %c0_0 = arith.constant 0 : index
    %0 = vector.load %arg2[%c0, %c0_0] : memref<16x32xf32, #tpu.memory_space<vmem>>, vector<16x32xf32>
    %c0_1 = arith.constant 0 : index
    %c0_2 = arith.constant 0 : index
    %1 = vector.load %arg3[%c0_1, %c0_2] : memref<32x32xf32, #tpu.memory_space<vmem>>, vector<32x32xf32>
    %cst = arith.constant dense<0.000000e+00> : vector<16x32xf32>
    %2 = tpu.matmul %0, %1, %cst {dimension_numbers = #tpu.dot_dimension_numbers<[1], [1], [0], [0], [0, 0, 1, 0], [], []>} : vector<16x32xf32>, vector<32x32xf32>, vector<16x32xf32> -> vector<16x32xf32>
    %c0_3 = arith.constant 0 : index
    %c0_4 = arith.constant 0 : index
    %3 = vector.load %arg4[%c0_3, %c0_4] : memref<1x32xf32, #tpu.memory_space<vmem>>, vector<1x32xf32>
    %4 = vector.broadcast %3 : vector<1x32xf32> to vector<16x32xf32>
    %5 = arith.addf %2, %4 : vector<16x32xf32>
    %c0_5 = arith.constant 0 : index
    %c0_6 = arith.constant 0 : index
    %6 = vector.load %arg5[%c0_5, %c0_6] : memref<16x32xf32, #tpu.memory_space<vmem>>, vector<16x32xf32>
    tpu.vector_store %arg5[%c0_5, %c0_6], %5 {strides = array<i32>} : memref<16x32xf32, #tpu.memory_space<vmem>>, vector<16x32xf32>,
    return
  }
  func.func @transform_0(%arg0: i32, %arg1: i32) -> (i32, i32) {
    %c0_i32 = arith.constant 0 : i32
    %c0_i32_0 = arith.constant 0 : i32
    return %arg0, %c0_i32 : i32, i32
  }
  func.func @transform_1(%arg0: i32, %arg1: i32) -> (i32, i32) {
    %c0_i32 = arith.constant 0 : i32
    %c0_i32_0 = arith.constant 0 : i32
    return %arg1, %c0_i32 : i32, i32
  }
  func.func @transform_2(%arg0: i32, %arg1: i32) -> (i32, i32) {
    %c0_i32 = arith.constant 0 : i32
    %c0_i32_0 = arith.constant 0 : i32
    return %c0_i32, %arg1 : i32, i32
  }
  func.func @transform_3(%arg0: i32, %arg1: i32) -> (i32, i32) {
    %c0_i32 = arith.constant 0 : i32
    return %arg0, %arg1 : i32, i32
  }
}

</mosaic_0001>

<llo_original>
// kernel: tpu_custom_call.1
$region0: #{tpu_custom_call.1}
  #allocation0 [shape = 'u32[]', space=smem, size = 0x4, offset = 0x4, fixed_abs, tag = 'smem constant byte address 0x4 - core index']
  #allocation1 [shape = 'u32[144,128]{1,0:T(1,128)}', space=vmem, size = 0x12000, scoped, tag = 'internal scratch']
  %s0 = inlined_call_operand.hbm [shape: f32[16,32], index: 0, kind: input, shape index: {}]
  %s1 = inlined_call_operand.hbm [shape: f32[32,32], index: 1, kind: input, shape index: {}]
  %s2 = inlined_call_operand.vmem [shape: f32[1,32], index: 2, kind: input, shape index: {}]
  %s3 = inlined_call_operand.hbm [shape: f32[16,32], index: 3, kind: output, shape index: {}]
  %s4 = sld [smem:[#allocation0]]
  $region30: #{tpu_custom_call.1} parent=0
    _
  %s6 = ssub.s32 1, %s4
  %s7 = scalar_select 0, %s6, %s4
  $region1: #{tpu_custom_call.1} parent=0
    #allocation2 [shape = 'u8[8192]{0}', space=vmem, size = 0x2000, scoped, tag = 'input window, operand 0, single buffered']
    #allocation3 [shape = 's32[1]{0}', space=sflag, size = 0x4, scoped, tag = 'scoped memory for tpu_custom_call.1']
    #allocation4 [shape = 's32[1]{0}', space=sflag, size = 0x4, scoped, tag = 'scoped memory for tpu_custom_call.1']
    #allocation5 [shape = 'u8[16384]{0}', space=vmem, size = 0x4000, scoped, tag = 'input window, operand 1, single buffered']
    #allocation6 [shape = 's32[1]{0}', space=sflag, size = 0x4, scoped, tag = 'scoped memory for tpu_custom_call.1']
    #allocation7 [shape = 'u8[8192]{0}', space=vmem, size = 0x2000, scoped, tag = 'output window, operand 0, single buffered']
    %8 = vsyncpa [#allocation3], 0
    %9 = vsyncpa [#allocation6], 0
    %10 = vsyncpa [#allocation4], 0
    // Predicated region
    $region2: #{tpu_custom_call.1} parent=1 // pred_check
      _
    $region3: #{tpu_custom_call.1} parent=1 // pred_check_branch
      %12 = sbr.rel (0) target = $region5
    $region4: #{tpu_custom_call.1} parent=1 // pred_region
      %s14 = ssub.s32 256, 256
      %15 = vsyncadd [#allocation3], %s14
      %s16 = sshll.u32 [#allocation2], 4
      %s17 = int_to_ptr.vmem [resolvable:$true] %s16
      %22 = dma.hbm_to_vmem [thread:$0]  %s0, 256, %s17, [#allocation3], 128, 128, 8
    $region5: #{tpu_custom_call.1} parent=1 // pred_fallthru
      _
    // Predicated region
    $region6: #{tpu_custom_call.1} parent=1 // pred_check
      _
    $region7: #{tpu_custom_call.1} parent=1 // pred_check_branch
      %24 = sbr.rel (0) target = $region9
    $region8: #{tpu_custom_call.1} parent=1 // pred_region
      %s26 = ssub.s32 512, 512
      %27 = vsyncadd [#allocation6], %s26
      %s28 = sshll.u32 [#allocation5], 4
      %s29 = int_to_ptr.vmem [resolvable:$true] %s28
      %34 = dma.hbm_to_vmem [thread:$0]  %s1, 512, %s29, [#allocation6], 128, 128, 8
    $region9: #{tpu_custom_call.1} parent=1 // pred_fallthru
      _
    // Predicated region
    $region10: #{tpu_custom_call.1} parent=1 // pred_check
      _
    $region11: #{tpu_custom_call.1} parent=1 // pred_check_branch
      %36 = sbr.rel (0) target = $region13
    $region12: #{tpu_custom_call.1} parent=1 // pred_region
      _
    $region13: #{tpu_custom_call.1} parent=1 // pred_fallthru
      _
    // Predicated region
    $region14: #{tpu_custom_call.1} parent=1 // pred_check
      _
    $region15: #{tpu_custom_call.1} parent=1 // pred_check_branch
      %38 = sbr.rel (0) target = $region17
    $region16: #{tpu_custom_call.1} parent=1 // pred_region
      %39 = dma.done [#allocation3], 256
    $region17: #{tpu_custom_call.1} parent=1 // pred_fallthru
      _
    // Predicated region
    $region18: #{tpu_custom_call.1} parent=1 // pred_check
      _
    $region19: #{tpu_custom_call.1} parent=1 // pred_check_branch
      %41 = sbr.rel (0) target = $region21
    $region20: #{tpu_custom_call.1} parent=1 // pred_region
      %42 = dma.done [#allocation6], 512
    $region21: #{tpu_custom_call.1} parent=1 // pred_fallthru
      _
    %v43 = vld [vmem:[#allocation2] sm:$0xff]
    %v44 = vld [vmem:[#allocation2 + $0x8] sm:$0xff]
    %v45 = vld [vmem:[#allocation5] sm:$0xff]
    %v46 = vld [vmem:[#allocation5 + $0x8] sm:$0xff]
    %v47 = vld [vmem:[#allocation5 + $0x10] sm:$0xff]
    %v48 = vld [vmem:[#allocation5 + $0x18] sm:$0xff]
    %v49 = vld [vmem:[%s2] sm:$0x1]
    %v51 = vlaneseq
    %v52 = vshrl.u32 %v51, 7
    %v53 = vsub.s32 0, %v52
    %v54 = vrot.slane %v49, %v53
    %vm56 = vcmask 261120
    %v58 = vsel %vm56, %v43, 0
    %v61 = vsel %vm56, %v44, 0
    %v64 = vsel %vm56, %v45, 0
    %v67 = vsel %vm56, %v46, 0
    %v70 = vsel %vm56, %v47, 0
    %v73 = vsel %vm56, %v48, 0
    %75 = vmatprep.subr.mxu0 0.0
    %76 = vmatpush1.xpose.msra.mxu0 0.0
    %77 = vmatprep.subr.mxu0 0.0
    %78 = vmatpush1.xpose.msra.mxu0 0.0
    %79 = vmatprep.subr.mxu0 0.0
    %80 = vmatpush1.xpose.msra.mxu0 0.0
    %81 = vmatprep.subr.mxu0 0.0
    %82 = vmatpush1.xpose.msra.mxu0 0.0
    %83 = vmatprep.subr.mxu0 0.0
    %84 = vmatpush1.xpose.msra.mxu0 0.0
    %85 = vmatprep.subr.mxu0 0.0
    %86 = vmatpush1.xpose.msra.mxu0 0.0
    %87 = vmatprep.subr.mxu0 0.0
    %88 = vmatpush1.xpose.msra.mxu0 0.0
    %89 = vmatprep.subr.mxu0 0.0
    %90 = vmatpush1.xpose.msra.mxu0 0.0
    %91 = vmatprep.subr.mxu0 0.0
    %92 = vmatpush1.xpose.msra.mxu0 0.0
    %93 = vmatprep.subr.mxu0 0.0
    %94 = vmatpush1.xpose.msra.mxu0 0.0
    %95 = vmatprep.subr.mxu0 0.0
    %96 = vmatpush1.xpose.msra.mxu0 0.0
    %97 = vmatprep.subr.mxu0 0.0
    %98 = vmatpush1.xpose.msra.mxu0 0.0
    %99 = vmatprep.subr.mxu0 0.0
    %100 = vmatpush1.xpose.msra.mxu0 %v73
    %101 = vmatprep.subr.mxu0 0.0
    %102 = vmatpush1.xpose.msra.mxu0 %v70
    %103 = vmatprep.subr.mxu0 0.0
    %104 = vmatpush1.xpose.msra.mxu0 %v67
    %105 = vmatprep.subr.mxu0 0.0
    %106 = vmatpush1.xpose.msra.mxu0 %v64
    %107 = vmatprep.subr.mxu0 0.0
    %108 = vmatpush2.xpose.msra.mxu0 0.0
    %109 = vmatprep.subr.mxu0 0.0
    %110 = vmatpush2.xpose.msra.mxu0 0.0
    %111 = vmatprep.subr.mxu0 0.0
    %112 = vmatpush2.xpose.msra.mxu0 0.0
    %113 = vmatprep.subr.mxu0 0.0
    %114 = vmatpush2.xpose.msra.mxu0 0.0
    %115 = vmatprep.subr.mxu0 0.0
    %116 = vmatpush2.xpose.msra.mxu0 0.0
    %117 = vmatprep.subr.mxu0 0.0
    %118 = vmatpush2.xpose.msra.mxu0 0.0
    %119 = vmatprep.subr.mxu0 0.0
    %120 = vmatpush2.xpose.msra.mxu0 0.0
    %121 = vmatprep.subr.mxu0 0.0
    %122 = vmatpush2.xpose.msra.mxu0 0.0
    %123 = vmatprep.subr.mxu0 0.0
    %124 = vmatpush2.xpose.msra.mxu0 0.0
    %125 = vmatprep.subr.mxu0 0.0
    %126 = vmatpush2.xpose.msra.mxu0 0.0
    %127 = vmatprep.subr.mxu0 0.0
    %128 = vmatpush2.xpose.msra.mxu0 0.0
    %129 = vmatprep.subr.mxu0 0.0
    %130 = vmatpush2.xpose.msra.mxu0 0.0
    %131 = vmatprep.subr.mxu0 0.0
    %132 = vmatpush2.xpose.msra.mxu0 0.0
    %133 = vmatprep.subr.mxu0 0.0
    %134 = vmatpush2.xpose.msra.mxu0 0.0
    %135 = vmatprep.subr.mxu0 0.0
    %136 = vmatpush2.xpose.msra.mxu0 0.0
    %137 = vmatprep.subr.mxu0 0.0
    %138 = vmatpush2.xpose.msra.mxu0 0.0
    %139 = vmatprep.mubr.f32.mxu0 0.0
    %140 = vmatmul.mubr.f32.gmra.mxu0 %v58
    %v141 = vpop.f32.mrf.mxu0
    %v142 = vadd.f32 %v54, %v141
    %v143 = vpop.f32.mrf.mxu0
    %144 = vmatprep.mubr.f32.mxu0 0.0
    %145 = vmatmul.mubr.f32.gmra.mxu0 %v61
    %v146 = vpop.f32.mrf.mxu0
    %v147 = vadd.f32 %v54, %v146
    %v148 = vpop.f32.mrf.mxu0
    %149 = vdwg.mxu0
    %150 = vst.msk [vmem:[#allocation7] sm:$0xff] %vm56, %v142
    %151 = vst.msk [vmem:[#allocation7 + $0x8] sm:$0xff] %vm56, %v147
    // Predicated region
    $region22: #{tpu_custom_call.1} parent=1 // pred_check
      _
    $region23: #{tpu_custom_call.1} parent=1 // pred_check_branch
      %153 = sbr.rel (0) target = $region25
    $region24: #{tpu_custom_call.1} parent=1 // pred_region
      %s155 = ssub.s32 256, 256
      %156 = vsyncadd [#allocation4], %s155
      %s157 = sshll.u32 [#allocation7], 4
      %s158 = int_to_ptr.vmem [resolvable:$true] %s157
      %163 = dma.vmem_to_hbm [thread:$0]  %s158, 256, %s3, [#allocation4], 128, 128, 8
    $region25: #{tpu_custom_call.1} parent=1 // pred_fallthru
      _
    // Predicated region
    $region26: #{tpu_custom_call.1} parent=1 // pred_check
      _
    $region27: #{tpu_custom_call.1} parent=1 // pred_check_branch
      %165 = sbr.rel (0) target = $region29
    $region28: #{tpu_custom_call.1} parent=1 // pred_region
      %166 = dma.done [#allocation4], 256
    $region29: #{tpu_custom_call.1} parent=1 // pred_fallthru
      _
    %167 = vsyncpa [#allocation3], 1
    %168 = vsyncpa [#allocation6], 1
    %169 = vsyncpa [#allocation4], 1

</llo_original>
